<compile_context>
chip_gen: v6e
topology: v6e:2x2x1
jax: 0.10.0
libtpu: 0.0.40
codegen_flags: <defaults>
</compile_context>

<pallas_src>
import jax
import jax.numpy as jnp
from jax.experimental import pallas as pl
from jax.experimental.pallas import tpu as pltpu


_LANE = 128
_SUBLANE = 8


def _round_up(x, m):
    return ((x + m - 1) // m) * m


def _conv_bn_lrelu_kernel(x_ref, p_ref, o_ref):
    """One (batch block, L_out tile) step of fused Conv1d + BN + LeakyReLU.

    x_ref: (nb, 3, tl)  de-interleaved patches (lanes = output positions)
    p_ref: (F, 4)       packed per-channel params: cols 0..2 = BN-folded conv
                        weights, col 3 = BN-folded shift
    o_ref: (nb, F, tl)  output block, already in PyTorch (N, F, L_out) layout
    """
    x = x_ref[...]                    # (nb, 3, tl)
    p = p_ref[...]                    # (F, 4)
    x0 = x[:, 0:1, :]                 # (nb, 1, tl)
    x1 = x[:, 1:2, :]
    x2 = x[:, 2:3, :]
    w0 = p[None, :, 0:1]              # (1, F, 1)
    w1 = p[None, :, 1:2]
    w2 = p[None, :, 2:3]
    c = p[None, :, 3:4]               # (1, F, 1)
    # 3 VPU broadcast-FMAs per output vreg; K=3 on the MXU would waste the array.
    z = w0 * x0 + w1 * x1 + w2 * x2 + c            # (nb, F, tl)
    # LeakyReLU, PyTorch default negative_slope = 0.01
    o_ref[...] = jnp.maximum(z, 0.01 * z).astype(o_ref.dtype)


def _vmem_capacity_bytes():
    try:
        cap = getattr(pltpu.get_tpu_info(), "vmem_capacity_bytes", None)
        if cap:
            return int(cap)
    except Exception:
        pass
    return 64 << 20  # conservative fallback: v7x per-TensorCore physical VMEM


def _pick_tiles(n, l_out, filters):
    """Generation-aware (batch rows per block, lane tile, vmem_limit_bytes)."""
    f_pad = _round_up(filters, _SUBLANE)
    vmem_cap = _vmem_capacity_bytes()
    # Explicit scoped-VMEM limit: 32 MiB (of 128 MiB on v5e/v6e, of 64 MiB/TC on v7x).
    vmem_limit = min(vmem_cap // 2, 32 << 20)
    # Budget for the double-buffered data blocks; leave headroom for the packed
    # (double-buffered) param block and compiler scratch.
    data_budget = vmem_limit - (4 << 20)

    def blocks_bytes(nb, tl):
        tl_pad = _round_up(tl, _LANE)
        # double-buffered input (3 sublanes pad to 8) + output (F pads to f_pad), f32
        return 2 * nb * (_SUBLANE + f_pad) * tl_pad * 4

    # Lane tile over the output-position axis: as large a multiple of 128 as the
    # budget allows (cap 16384); a shorter-than-one-tile axis uses the full dim
    # (always legal).  A non-divisible L_out gets a ragged (masked) tail block
    # via the cdiv grid instead of one giant full-axis block.
    if l_out <= _LANE:
        tl = l_out
    else:
        tl = _LANE
        max_tl = min((l_out // _LANE) * _LANE, 16384)
        while tl * 2 <= max_tl and blocks_bytes(1, tl * 2) <= data_budget:
            tl *= 2

    grid_t = -(-l_out // tl)
    out_row_bytes = f_pad * _round_up(tl, _LANE) * 4   # output bytes per batch row / step

    # Batch rows per block: target ~2 MiB of output per grid step to amortize the
    # ~0.35 us per-step overhead, but keep at least two grid steps when possible
    # (v7x megacore) and stay inside the VMEM budget.
    target_out = 2 << 20
    nb_cap = n if grid_t > 1 else max(1, n // 2)
    nb_target = max(1, target_out // max(1, out_row_bytes))
    nb_budget = max(1, data_budget // max(1, blocks_bytes(1, tl)))
    nb = max(1, min(nb_cap, nb_target, nb_budget))
    return nb, tl, vmem_limit


def convolution_block(x, weight, bias, gamma, beta, *, eps=1e-5):
    """x: (N, 1, L) f32. weight: (F, 1, 3), bias/gamma/beta: (F,).

    Returns (N, F, L_out), L_out = (L - 3)//3 + 1, matching
    Conv1d(1, F, k=3, s=3, p=0) -> BatchNorm1d (train-mode batch stats) -> LeakyReLU.
    """
    N, C, L = x.shape
    assert C == 1
    F = weight.shape[0]
    L_out = (L - 3) // 3 + 1
    M = N * L_out

    # Non-overlapping stride-3 patches as a free reshape view of x.
    patches = x[:, 0, : L_out * 3].reshape(N, L_out, 3).astype(jnp.float32)

    # Analytic BatchNorm training statistics, computed from the un-transposed
    # patches view (single stats read of x, no full mean-centered temp).
    # Moments are taken about a cheap data-dependent shift (the first patch):
    # shift invariance keeps Cov exact while killing f32 cancellation in the
    # E[qq^T] - E[q]E[q]^T correction when the input has a large DC offset.
    w = weight.reshape(F, 3).astype(jnp.float32)
    shift0 = patches[0, 0, :]                                   # (3,)
    q = patches - shift0
    s1 = jnp.sum(q, axis=(0, 1)) / M                            # (3,)  E[x - shift]
    s2 = jnp.einsum("ntk,ntj->kj", q, q) / M                    # (3,3) E[(x-shift)(x-shift)^T]
    cov = s2 - jnp.outer(s1, s1)                                # (3,3) biased covariance
    xm = s1 + shift0                                            # (3,)  column mean of patches
    mean = w @ xm + bias                                        # (F,)  E[conv output]
    var = jnp.maximum(jnp.einsum("fk,kj,fj->f", w, cov, w), 0.0)  # (F,) biased Var
    scale = gamma * jax.lax.rsqrt(var + eps)                    # (F,)
    w_fold = scale[:, None] * w                                 # (F, 3)
    shift_ch = scale * (bias - mean) + beta                     # (F,)
    params = jnp.concatenate([w_fold, shift_ch[:, None]], axis=1)  # (F, 4) single invariant operand

    # De-interleave so output positions sit on the lane axis for both the load
    # and the lane-dense store.  (An in-kernel stride-3 lane de-interleave would
    # save this pass but needs a lane gather; kept as a plain XLA transpose.)
    x_d = jnp.transpose(patches, (0, 2, 1))                     # (N, 3, L_out)

    nb, tl, vmem_limit = _pick_tiles(N, L_out, F)
    grid = (-(-N // nb), -(-L_out // tl))

    cost = pl.CostEstimate(
        flops=8 * M * F,
        transcendentals=0,
        bytes_accessed=4 * (3 * M + F * M + 4 * F),
    )

    out = pl.pallas_call(
        _conv_bn_lrelu_kernel,
        out_shape=jax.ShapeDtypeStruct((N, F, L_out), jnp.float32),
        grid=grid,
        in_specs=[
            pl.BlockSpec((nb, 3, tl), lambda i, t: (i, 0, t)),
            pl.BlockSpec((F, 4), lambda i, t: (0, 0)),
        ],
        out_specs=pl.BlockSpec((nb, F, tl), lambda i, t: (i, 0, t)),
        compiler_params=pltpu.CompilerParams(
            dimension_semantics=("parallel", "parallel"),
            vmem_limit_bytes=int(vmem_limit),
        ),
        cost_estimate=cost,
    )(x_d, params)

    return out


def _reference(x, weight, bias, gamma, beta):
    N, _, L = x.shape
    F = weight.shape[0]
    L_out = (L - 3) // 3 + 1
    patches = x[:, 0, : L_out * 3].reshape(N, L_out, 3)
    y = jnp.einsum("ntk,fk->nft", patches, weight.reshape(F, 3)) + bias[None, :, None]
    mean = jnp.mean(y, axis=(0, 2), keepdims=True)
    var = jnp.mean((y - mean) ** 2, axis=(0, 2), keepdims=True)
    y_hat = (y - mean) / jnp.sqrt(var + 1e-5)
    z = gamma[None, :, None] * y_hat + beta[None, :, None]
    return jnp.where(z >= 0.0, z, 0.01 * z)


if __name__ == "__main__":
    key = jax.random.PRNGKey(0)
    k_x, k_w, k_b = jax.random.split(key, 3)

    N, L, filters = 2, 48, 8          # small shapes; L_out = 16
    x = jax.random.normal(k_x, (N, 1, L), dtype=jnp.float32)

    # Deterministic synthetic parameters (shapes match the torch module __init__)
    fan_in = 1 * 3
    bound = 1.0 / (fan_in ** 0.5)
    weight = jax.random.uniform(k_w, (filters, 1, 3), minval=-bound, maxval=bound,
                                dtype=jnp.float32)
    bias = jax.random.uniform(k_b, (filters,), minval=-bound, maxval=bound,
                              dtype=jnp.float32)
    gamma = jnp.ones((filters,), jnp.float32)   # BatchNorm1d default affine init
    beta = jnp.zeros((filters,), jnp.float32)

    out = convolution_block(x, weight, bias, gamma, beta)
    jax.block_until_ready(out)

    ref = _reference(x, weight, bias, gamma, beta)
    assert out.shape == (N, filters, (L - 3) // 3 + 1)
    assert jnp.allclose(out, ref, atol=1e-4, rtol=1e-4), float(jnp.max(jnp.abs(out - ref)))

    print("KERNEL_OK")
</pallas_src>

<mosaic_0001>
module attributes {stable_mosaic.version = 11 : i64} {
  func.func @_conv_bn_lrelu_kernel(%arg0: i32, %arg1: i32, %arg2: memref<1x3x16xf32, #tpu.memory_space<vmem>>, %arg3: memref<8x4xf32, #tpu.memory_space<vmem>>, %arg4: memref<1x8x16xf32, #tpu.memory_space<vmem>>) attributes {dimension_semantics = [#tpu.dimension_semantics<parallel>, #tpu.dimension_semantics<parallel>], iteration_bounds = array<i64: 2, 1>, scalar_prefetch = 0 : i64, scratch_operands = 0 : i64, tpu.core_type = #tpu.core_type<tc>, window_params = [{transform_indices = @transform_0, window_bounds = array<i64: 1, 3, 16>}, {pipeline_mode = #tpu.pipeline_mode<synchronous>, transform_indices = @transform_1, window_bounds = array<i64: 8, 4>}, {transform_indices = @transform_2, window_bounds = array<i64: 1, 8, 16>}]} {
    %c0 = arith.constant 0 : index
    %c0_0 = arith.constant 0 : index
    %c0_1 = arith.constant 0 : index
    %0 = vector.load %arg2[%c0, %c0_0, %c0_1] : memref<1x3x16xf32, #tpu.memory_space<vmem>>, vector<1x3x16xf32>
    %c0_2 = arith.constant 0 : index
    %c0_3 = arith.constant 0 : index
    %1 = vector.load %arg3[%c0_2, %c0_3] : memref<8x4xf32, #tpu.memory_space<vmem>>, vector<8x4xf32>
    %2 = vector.extract_strided_slice %0 {offsets = [0, 0, 0], sizes = [1, 1, 16], strides = [1, 1, 1]} : vector<1x3x16xf32> to vector<1x1x16xf32>
    %3 = vector.extract_strided_slice %0 {offsets = [0, 1, 0], sizes = [1, 1, 16], strides = [1, 1, 1]} : vector<1x3x16xf32> to vector<1x1x16xf32>
    %4 = vector.extract_strided_slice %0 {offsets = [0, 2, 0], sizes = [1, 1, 16], strides = [1, 1, 1]} : vector<1x3x16xf32> to vector<1x1x16xf32>
    %5 = vector.extract_strided_slice %1 {offsets = [0, 0], sizes = [8, 1], strides = [1, 1]} : vector<8x4xf32> to vector<8x1xf32>
    %6 = vector.shape_cast %5 : vector<8x1xf32> to vector<1x8x1xf32>
    %7 = vector.extract_strided_slice %1 {offsets = [0, 1], sizes = [8, 1], strides = [1, 1]} : vector<8x4xf32> to vector<8x1xf32>
    %8 = vector.shape_cast %7 : vector<8x1xf32> to vector<1x8x1xf32>
    %9 = vector.extract_strided_slice %1 {offsets = [0, 2], sizes = [8, 1], strides = [1, 1]} : vector<8x4xf32> to vector<8x1xf32>
    %10 = vector.shape_cast %9 : vector<8x1xf32> to vector<1x8x1xf32>
    %11 = vector.extract_strided_slice %1 {offsets = [0, 3], sizes = [8, 1], strides = [1, 1]} : vector<8x4xf32> to vector<8x1xf32>
    %12 = vector.shape_cast %11 : vector<8x1xf32> to vector<1x8x1xf32>
    %13 = vector.broadcast %6 : vector<1x8x1xf32> to vector<1x8x16xf32>
    %14 = vector.broadcast %2 : vector<1x1x16xf32> to vector<1x8x16xf32>
    %15 = arith.mulf %13, %14 : vector<1x8x16xf32>
    %16 = vector.broadcast %8 : vector<1x8x1xf32> to vector<1x8x16xf32>
    %17 = vector.broadcast %3 : vector<1x1x16xf32> to vector<1x8x16xf32>
    %18 = arith.mulf %16, %17 : vector<1x8x16xf32>
    %19 = arith.addf %15, %18 : vector<1x8x16xf32>
    %20 = vector.broadcast %10 : vector<1x8x1xf32> to vector<1x8x16xf32>
    %21 = vector.broadcast %4 : vector<1x1x16xf32> to vector<1x8x16xf32>
    %22 = arith.mulf %20, %21 : vector<1x8x16xf32>
    %23 = arith.addf %19, %22 : vector<1x8x16xf32>
    %24 = vector.broadcast %12 : vector<1x8x1xf32> to vector<1x8x16xf32>
    %25 = arith.addf %23, %24 : vector<1x8x16xf32>
    %cst = arith.constant 0.00999999977 : f32
    %26 = vector.broadcast %cst : f32 to vector<1x8x16xf32>
    %27 = arith.mulf %26, %25 : vector<1x8x16xf32>
    %28 = arith.maximumf %25, %27 : vector<1x8x16xf32>
    %c0_4 = arith.constant 0 : index
    %c0_5 = arith.constant 0 : index
    %c0_6 = arith.constant 0 : index
    %29 = vector.load %arg4[%c0_4, %c0_5, %c0_6] : memref<1x8x16xf32, #tpu.memory_space<vmem>>, vector<1x8x16xf32>
    tpu.vector_store %arg4[%c0_4, %c0_5, %c0_6], %28 {strides = array<i32>} : memref<1x8x16xf32, #tpu.memory_space<vmem>>, vector<1x8x16xf32>,
    return
  }
  func.func @transform_0(%arg0: i32, %arg1: i32) -> (i32, i32, i32) {
    %c0_i32 = arith.constant 0 : i32
    %c0_i32_0 = arith.constant 0 : i32
    return %arg0, %c0_i32, %arg1 : i32, i32, i32
  }
  func.func @transform_1(%arg0: i32, %arg1: i32) -> (i32, i32) {
    %c0_i32 = arith.constant 0 : i32
    %c0_i32_0 = arith.constant 0 : i32
    %c0_i32_1 = arith.constant 0 : i32
    return %c0_i32, %c0_i32_0 : i32, i32
  }
  func.func @transform_2(%arg0: i32, %arg1: i32) -> (i32, i32, i32) {
    %c0_i32 = arith.constant 0 : i32
    %c0_i32_0 = arith.constant 0 : i32
    return %arg0, %c0_i32, %arg1 : i32, i32, i32
  }
}

</mosaic_0001>

<llo_original>
// kernel: tpu_custom_call.1
$region0: #{tpu_custom_call.1}
  #allocation0 [shape = 'u32[]', space=smem, size = 0x4, offset = 0x4, fixed_abs, tag = 'smem constant byte address 0x4 - core index']
  #allocation1 [shape = 'u32[144,128]{1,0:T(1,128)}', space=vmem, size = 0x12000, scoped, tag = 'internal scratch']
  %s0 = inlined_call_operand.vmem [shape: f32[2,3,16], index: 0, kind: input, shape index: {}]
  %s1 = inlined_call_operand.vmem [shape: f32[8,4], index: 1, kind: input, shape index: {}]
  %s2 = inlined_call_operand.hbm [shape: f32[2,8,16], index: 2, kind: output, shape index: {}]
  %s3 = sld [smem:[#allocation0]]
  $region41: #{tpu_custom_call.1} parent=0
    _
  %s5 = ssub.s32 1, %s3
  %s6 = scalar_select 0, %s5, %s3
  $region1: #{tpu_custom_call.1} parent=0
    #allocation2 [shape = 'u8[8192]{0}', space=vmem, size = 0x2000, scoped, tag = 'output window, operand 0']
    #allocation3 [shape = 's32[2]{0}', space=sflag, size = 0x8, scoped, tag = 'scoped memory for tpu_custom_call.1']
    %7 = vsyncpa [#allocation3], 0
    %s8 = scalar_lea.sflag [#allocation3], 1
    %9 = vsyncpa %s8, 0
    loop: start=0, step=1, limit=4
    $region2: #{tpu_custom_call.1} parent=1 // loop_pre_header
      _
    $region3: #{tpu_custom_call.1} parent=1 // loop_header
      %s11 = sphi 0, %s15
      %p12 = scmp.ge.s32.totalorder %s11, 4
      %s18 = sphi 0, %s30
      %s19 = sphi 0, %s26
      %s20 = sphi 0, %s18
      %s21 = sphi 0, %s19
      %s22 = sphi 0, %s20
      %s23 = sphi 0, %s21
      %s35 = sphi 0, %s37
      %s38 = sphi 0, %s35
      %s39 = sphi 0, %s38
      %s55 = sphi 0, %s39
      %s59 = sphi 0, %s59
      %s61 = sphi 0, %s59
      %s62 = sphi 0, %s61
      %s76 = sphi 0, %s62
      %s84 = sphi 0, %s86
      %s87 = sphi 0, %s84
      %s88 = sphi 0, %s87
      %s104 = sphi 0, %s88
    $region4: #{tpu_custom_call.1} parent=1 // loop_header_branch
      %14 = sbr.rel (%p12) target = $region8
    $region5: #{tpu_custom_call.1} parent=1 // loop_body
      %s16 = ssub.s32 %s11, 1
      %s17 = ssub.s32 %s11, 2
      %s24 = sadd.s32 1, %s19
      %p25 = scmp.ge.s32.totalorder %s24, 1
      %s26 = scalar_select %p25, 0, %s24
      %s27 = sadd.s32 1, %s18
      %s28 = scalar_select %p25, %s27, %s18
      %p29 = scmp.ge.s32.totalorder %s28, 2
      %s30 = scalar_select %p29, 0, %s28
      %s31 = ssub.s32 %s18, %s30
      %s32 = ssub.s32 %s19, %s26
      %s33 = sor.u32 %s31, %s32
      %p34 = scmp.eq.s32.totalorder %s33, 0
      %s36 = sadd.s32 %s35, 1
      %s37 = scalar_select %p34, %s35, %s36
      %p40 = pneg %p34
      %p41 = scmp.eq.s32.totalorder %s11, 1
      %p42 = por %p40, %p41
      %p43 = scmp.ne.s32.totalorder %s35, %s38
      %p44 = scmp.eq.s32.totalorder %s11, 0
      %p45 = por %p43, %p44
      %p46 = scmp.ne.s32.totalorder %s35, %s38
      %p47 = scmp.eq.s32.totalorder %s16, 1
      %p48 = por %p46, %p47
      %p49 = scmp.ne.s32.totalorder %s38, %s39
      %p50 = scmp.eq.s32.totalorder %s16, 0
      %p51 = por %p49, %p50
      %p52 = scmp.ne.s32.totalorder %s38, %s39
      %p53 = scmp.eq.s32.totalorder %s17, 1
      %p54 = por %p52, %p53
      %p56 = scmp.ne.s32.totalorder %s39, %s55
      %p57 = scmp.eq.s32.totalorder %s17, 0
      %p58 = por %p56, %p57
      %s60 = sadd.s32 %s59, 1
      %p63 = scmp.eq.s32.totalorder %s11, 1
      %p64 = scmp.ne.s32.totalorder %s59, %s61
      %p65 = scmp.eq.s32.totalorder %s11, 0
      %p66 = por %p64, %p65
      %p67 = scmp.ne.s32.totalorder %s59, %s61
      %p68 = scmp.eq.s32.totalorder %s16, 1
      %p69 = por %p67, %p68
      %p70 = scmp.ne.s32.totalorder %s61, %s62
      %p71 = scmp.eq.s32.totalorder %s16, 0
      %p72 = por %p70, %p71
      %p73 = scmp.ne.s32.totalorder %s61, %s62
      %p74 = scmp.eq.s32.totalorder %s17, 1
      %p75 = por %p73, %p74
      %p77 = scmp.ne.s32.totalorder %s62, %s76
      %p78 = scmp.eq.s32.totalorder %s17, 0
      %p79 = por %p77, %p78
      %s80 = ssub.s32 %s18, %s30
      %s81 = ssub.s32 %s19, %s26
      %s82 = sor.u32 %s80, %s81
      %p83 = scmp.eq.s32.totalorder %s82, 0
      %s85 = sadd.s32 %s84, 1
      %s86 = scalar_select %p83, %s84, %s85
      %p89 = pneg %p83
      %p90 = scmp.eq.s32.totalorder %s11, 1
      %p91 = por %p89, %p90
      %p92 = scmp.ne.s32.totalorder %s84, %s87
      %p93 = scmp.eq.s32.totalorder %s11, 0
      %p94 = por %p92, %p93
      %p95 = scmp.ne.s32.totalorder %s84, %s87
      %p96 = scmp.eq.s32.totalorder %s16, 1
      %p97 = por %p95, %p96
      %p98 = scmp.ne.s32.totalorder %s87, %s88
      %p99 = scmp.eq.s32.totalorder %s16, 0
      %p100 = por %p98, %p99
      %p101 = scmp.ne.s32.totalorder %s87, %s88
      %p102 = scmp.eq.s32.totalorder %s17, 1
      %p103 = por %p101, %p102
      %p105 = scmp.ne.s32.totalorder %s88, %s104
      %p106 = scmp.eq.s32.totalorder %s17, 0
      %p107 = por %p105, %p106
      %p108 = scmp.le.s32.totalorder 1, %s11
      %p109 = scmp.lt.s32.totalorder %s11, 3
      %p110 = pnand %p108, %p109
      %p111 = pneg %p110
      // Predicated region
      $region9: #{tpu_custom_call.1} parent=5 // pred_check
        _
      $region10: #{tpu_custom_call.1} parent=5 // pred_check_branch
        %113 = sbr.rel (%p110) target = $region12
      $region11: #{tpu_custom_call.1} parent=5 // pred_region
        %s114 = ssub.s32 %s11, 1
        // Predicated region
        $region13: #{tpu_custom_call.1} parent=11 // pred_check
          %p115 = pneg %p72
        $region14: #{tpu_custom_call.1} parent=11 // pred_check_branch
          %117 = sbr.rel (%p115) target = $region16
        $region15: #{tpu_custom_call.1} parent=11 // pred_region
          _
        $region16: #{tpu_custom_call.1} parent=11 // pred_fallthru
          _
      $region12: #{tpu_custom_call.1} parent=5 // pred_fallthru
        _
      %p118 = scmp.lt.s32.totalorder %s11, 2
      // Predicated region
      $region17: #{tpu_custom_call.1} parent=5 // pred_check
        %p119 = pneg %p118
      $region18: #{tpu_custom_call.1} parent=5 // pred_check_branch
        %121 = sbr.rel (%p119) target = $region20
      $region19: #{tpu_custom_call.1} parent=5 // pred_region
        // Predicated region
        $region21: #{tpu_custom_call.1} parent=19 // pred_check
          %p122 = pneg %p45
        $region22: #{tpu_custom_call.1} parent=19 // pred_check_branch
          %124 = sbr.rel (%p122) target = $region24
        $region23: #{tpu_custom_call.1} parent=19 // pred_region
          %p125 = scmp.lt.s32.totalorder %s18, 1
          %s126 = scalar_select %p125, %s18, 1
          %p127 = scmp.lt.s32.totalorder %s19, 0
          %s128 = scalar_select %p127, %s19, 0
          %s129 = sadd.s32 %s128, %s126
          %s130 = smul.addr %s129, 4
          %s131 = scalar_lea.vmem %s0, %s130
        $region24: #{tpu_custom_call.1} parent=19 // pred_fallthru
          _
      $region20: #{tpu_custom_call.1} parent=5 // pred_fallthru
        _
      %p132 = scmp.le.s32.totalorder 1, %s11
      %p133 = scmp.lt.s32.totalorder %s11, 3
      %p134 = pnand %p132, %p133
      %p135 = pneg %p134
      // Predicated region
      $region25: #{tpu_custom_call.1} parent=5 // pred_check
        _
      $region26: #{tpu_custom_call.1} parent=5 // pred_check_branch
        %137 = sbr.rel (%p134) target = $region28
      $region27: #{tpu_custom_call.1} parent=5 // pred_region
        %s138 = ssub.s32 %s11, 1
        %p139 = scmp.lt.s32.totalorder %s20, 1
        %s140 = scalar_select %p139, %s20, 1
        %p141 = scmp.lt.s32.totalorder %s21, 0
        %s142 = scalar_select %p141, %s21, 0
        %s143 = sadd.s32 %s142, %s140
        %s144 = smul.addr %s143, 4
        %s145 = scalar_lea.vmem %s0, %s144
        %p146 = pneg %p51
        %p147 = pneg %p48
        %p148 = pneg %p72
        %p149 = pneg %p69
        %p150 = pneg %p100
        %p151 = pneg %p97
        %s152 = sand.u32 %s87, 1
        %s153 = scalar_lea.sflag [#allocation3], %s152
        %s154 = sand.u32 %s87, 1
        %s155 = smul.addr %s154, 8
        %s156 = scalar_lea.vmem [#allocation2], %s155
        %p157 = scmp.lt.s32.totalorder %s20, 1
        %s158 = scalar_select %p157, %s20, 1
        %p159 = scmp.lt.s32.totalorder %s21, 0
        %s160 = scalar_select %p159, %s21, 0
        %s161 = sadd.s32 %s160, %s158
        %s162 = smul.addr %s161, 4
        %s163 = scalar_lea.vmem %s0, %s162
        %v164 = vld [vmem:[%s163] sm:$0x7]
        %v165 = vld [vmem:[%s1] sm:$0xff]
        %167 = vset.pattern.permute.xlu0 0
        %168 = vperm.xlu0 %167, %v165
        %v169 = vpop.permute.xlu0 %168
        %v171 = vlaneseq
        %v172 = vshrl.u32 %v171, 7
        %v173 = vsub.s32 0, %v172
        %v174 = vrot.slane %v164, %v173
        %v175 = vmul.f32 %v169, %v174
        %176 = vset.pattern.permute.xlu0 1
        %177 = vperm.xlu0 %176, %v165
        %v178 = vpop.permute.xlu0 %177
        %v180 = vlaneseq
        %v181 = vshrl.u32 %v180, 7
        %v182 = vsub.s32 1, %v181
        %v183 = vrot.slane %v164, %v182
        %v184 = vmul.f32 %v178, %v183
        %v185 = vadd.f32 %v175, %v184
        %186 = vset.pattern.permute.xlu0 2
        %187 = vperm.xlu0 %186, %v165
        %v188 = vpop.permute.xlu0 %187
        %v190 = vlaneseq
        %v191 = vshrl.u32 %v190, 7
        %v192 = vsub.s32 2, %v191
        %v193 = vrot.slane %v164, %v192
        %v194 = vmul.f32 %v188, %v193
        %v195 = vadd.f32 %v185, %v194
        %196 = vset.pattern.permute.xlu0 3
        %197 = vperm.xlu0 %196, %v165
        %v198 = vpop.permute.xlu0 %197
        %v200 = vadd.f32 %v195, %v198
        %v201 = vmul.f32 %v200, 0.01
        %v202 = vmax.f32 %v200, %v201
        %vm203 = vcmask 130048
        %204 = vst.msk [vmem:[%s156] sm:$0xff] %vm203, %v202
        %s205 = sand.u32 %s87, 1
        %s206 = scalar_lea.sflag [#allocation3], %s205
        %s207 = sand.u32 %s87, 1
        %s208 = smul.addr %s207, 8
        %s209 = scalar_lea.vmem [#allocation2], %s208
        // Predicated region
        $region29: #{tpu_custom_call.1} parent=27 // pred_check
          %p210 = pneg %p97
        $region30: #{tpu_custom_call.1} parent=27 // pred_check_branch
          %212 = sbr.rel (%p210) target = $region32
        $region31: #{tpu_custom_call.1} parent=27 // pred_region
          %s214 = ssub.s32 128, 128
          %215 = vsyncadd %s206, %s214
          %s216 = sadd.s32 %s21, %s20
          %s217 = smul.addr %s216, 128
          %s218 = scalar_lea.hbm %s2, %s217
          %s220 = sshll.u32 %s209, 4
          %s221 = int_to_ptr.vmem [resolvable:$true] %s220
          %223 = dma.vmem_to_hbm [thread:$0]  %s221, 128, %s218, %s206
        $region32: #{tpu_custom_call.1} parent=27 // pred_fallthru
          _
      $region28: #{tpu_custom_call.1} parent=5 // pred_fallthru
        _
      %p224 = scmp.le.s32.totalorder 2, %s11
      // Predicated region
      $region33: #{tpu_custom_call.1} parent=5 // pred_check
        %p225 = pneg %p224
      $region34: #{tpu_custom_call.1} parent=5 // pred_check_branch
        %227 = sbr.rel (%p225) target = $region36
      $region35: #{tpu_custom_call.1} parent=5 // pred_region
        %s228 = ssub.s32 %s11, 2
        // Predicated region
        $region37: #{tpu_custom_call.1} parent=35 // pred_check
          %p229 = pneg %p103
        $region38: #{tpu_custom_call.1} parent=35 // pred_check_branch
          %231 = sbr.rel (%p229) target = $region40
        $region39: #{tpu_custom_call.1} parent=35 // pred_region
          %s232 = sand.u32 %s88, 1
          %s233 = scalar_lea.sflag [#allocation3], %s232
          %s234 = sand.u32 %s88, 1
          %s235 = smul.addr %s234, 8
          %s236 = scalar_lea.vmem [#allocation2], %s235
          %237 = dma.done %s233, 128
        $region40: #{tpu_custom_call.1} parent=35 // pred_fallthru
          _
      $region36: #{tpu_custom_call.1} parent=5 // pred_fallthru
        _
    $region6: #{tpu_custom_call.1} parent=1 // loop_footer
      %s15 = sadd.s32 1, %s11
    $region7: #{tpu_custom_call.1} parent=1 // loop_footer_branch
      %10 = sbr.rel target = $region3
    $region8: #{tpu_custom_call.1} parent=1 // loop_exit
      _
    %238 = vsyncpa [#allocation3], 1
    %s239 = scalar_lea.sflag [#allocation3], 1
    %240 = vsyncpa %s239, 1

</llo_original>
